<compile_context>
chip_gen: v6e
topology: v6e:2x2x1
jax: 0.10.0
libtpu: 0.0.40
codegen_flags: <defaults>
</compile_context>

<pallas_src>
import functools

import jax
import jax.numpy as jnp
from jax.experimental import pallas as pl
from jax.experimental.pallas import tpu as pltpu


# ----------------------------- hparams (synthetic) -----------------------------
CLASS_NUM = 4
HIDDEN_SIZE = 32
CLS_EMB_DIM = 8
GW_HIDDEN_DIM = 32
WEIGHT_OUTPUT_DIM = 1            # VPU-reduction path assumes the default of 1
WEIGHT_SCALE = 1.0
IS_DEEPER_WEIGHT = False
HIDDEN_SIZE_INPUT = HIDDEN_SIZE + CLS_EMB_DIM


# --------------------------------- Pallas kernel --------------------------------
def _full_weight_kernel(x_ref, w1_ref, emb_ref, w2_ref, b2_ref, out_ref, *,
                        class_num, hidden_size, weight_scale):
    """Fused gather + concat-MLP: sigmoid(relu([emb(y), x] @ W1 + b1) . w2 + b2)."""
    xa = x_ref[...]                                                # (tile, hidden+1) bf16

    # Main projection on the MXU (bf16 in, f32 accumulate).  Row `hidden_size`
    # of W1 is zero, so the folded label column contributes nothing here.
    z = jnp.dot(xa, w1_ref[...], preferred_element_type=jnp.float32)   # (tile, H)

    # Embedding (+ b1) contribution: per-row table select on the VPU instead of
    # a K=class_num one-hot MXU matmul.  `emb_ref` already includes b1.
    # NOTE: labels outside [0, class_num) would select the last row here; the
    # PyTorch nn.Embedding would raise instead.
    lab = xa[:, hidden_size:hidden_size + 1].astype(jnp.float32)        # (tile, 1)
    tbl = emb_ref[...]                                                  # (class_num, H) f32
    emb = tbl[class_num - 1]
    for c in range(class_num - 2, -1, -1):                              # compile-time unroll
        emb = jnp.where(lab == float(c), tbl[c], emb)                   # (tile, H)
    z = z + emb

    a1 = jnp.maximum(z, 0.0)                                       # ReLU (Dropout = id in eval)

    # Second Linear has N = 1: per-lane multiply + cross-lane reduce (VPU/XLU)
    # instead of a 1-column MXU matmul.  b2 is a scalar read from SMEM.
    row = jnp.sum(a1 * w2_ref[...], axis=-1) + b2_ref[0]           # (tile,)
    w = jax.nn.sigmoid(row)
    if weight_scale != 1.0:                                        # compile-time constant
        w = w * weight_scale
    out_ref[...] = w[None, :].astype(out_ref.dtype)                # lane-dense (1, tile)


# --------------------------------- tiling helpers --------------------------------
def _round_up(x, m):
    return ((x + m - 1) // m) * m


def _pick_batch_tile(batch):
    """Returns (tile_rows, num_tiles)."""
    if batch <= 512:
        # One full-array block: block dims equal to array dims are exempt from
        # the (8,128) divisibility rule, so no host-side padding is needed.
        return batch, 1
    # Large batches: big lane-aligned tiles (grid-step overhead dominates small
    # tiles), capped at 8192 rows; at least two tiles so the "parallel" grid
    # axis can split across v7x's two TensorCores.  At tile=8192 the
    # double-buffered VMEM footprint is ~4.6 MiB (x block lane-pads 33->128 in
    # bf16: 2 MiB/buffer), well under every generation's scoped default.
    tile = min(8192, _round_up(pl.cdiv(batch, 2), 128))
    return tile, pl.cdiv(batch, tile)


# --------------------------------- model wrapper ---------------------------------
def init_params(key):
    """Deterministic synthetic parameter init (shapes match the PyTorch module)."""
    k_emb, k_w1, k_b1, k_w2, k_b2 = jax.random.split(key, 5)
    cls_emb = jax.random.normal(k_emb, (CLASS_NUM, CLS_EMB_DIM), jnp.float32)
    # Linear weights stored as (in_dim, out_dim)  (transposed PyTorch layout).
    lim1 = 1.0 / jnp.sqrt(HIDDEN_SIZE_INPUT)
    w1 = jax.random.uniform(k_w1, (HIDDEN_SIZE_INPUT, GW_HIDDEN_DIM),
                            jnp.float32, -lim1, lim1)
    b1 = jax.random.uniform(k_b1, (1, GW_HIDDEN_DIM), jnp.float32, -lim1, lim1)
    lim2 = 1.0 / jnp.sqrt(GW_HIDDEN_DIM)
    w2 = jax.random.uniform(k_w2, (GW_HIDDEN_DIM, WEIGHT_OUTPUT_DIM),
                            jnp.float32, -lim2, lim2)
    b2 = jax.random.uniform(k_b2, (1, WEIGHT_OUTPUT_DIM), jnp.float32, -lim2, lim2)
    return dict(cls_emb=cls_emb, w1=w1, b1=b1, w2=w2, b2=b2)


@jax.jit
def full_weight_model_forward(params, x_feature, y_label):
    """FullWeightModel.forward default path: returns `weight` of shape (B, 1)."""
    x_feature = jax.lax.stop_gradient(x_feature)                   # x_feature.detach()
    batch, hidden_size = x_feature.shape
    cls_emb, w1, b1 = params["cls_emb"], params["w1"], params["b1"]
    w2, b2 = params["w2"], params["b2"]
    class_num, cls_emb_dim = cls_emb.shape
    gw_hidden = w1.shape[1]

    # Fold the tiny class-embedding table through the first Linear once, and
    # pre-add b1 (each example selects exactly one row, so the bias folds in).
    emb_proj = (jnp.dot(cls_emb, w1[:cls_emb_dim],
                        preferred_element_type=jnp.float32) + b1)   # (class_num, H) f32
    # x-part of W1 plus a zero row for the folded label column; stored bf16.
    w1_aug = jnp.concatenate(
        [w1[cls_emb_dim:], jnp.zeros((1, gw_hidden), w1.dtype)], axis=0
    ).astype(jnp.bfloat16)                                          # (hidden+1, H)
    w2row = w2.reshape(1, gw_hidden).astype(jnp.float32)            # (1, H)
    b2s = b2.reshape(1).astype(jnp.float32)                         # SMEM scalar

    # Fold the label into x as column `hidden_size` (labels 0..class_num-1 are
    # exact in bf16); single fused cast+concat pass over x, no separate label
    # DMA stream and no (tile, 1) lane-inflated block.
    x_aug = jnp.concatenate(
        [x_feature.astype(jnp.bfloat16),
         y_label.astype(jnp.bfloat16).reshape(batch, 1)], axis=1)   # (B, hidden+1) bf16

    tile, num_tiles = _pick_batch_tile(batch)

    kernel = functools.partial(_full_weight_kernel, class_num=class_num,
                               hidden_size=hidden_size,
                               weight_scale=float(WEIGHT_SCALE))
    cost = pl.CostEstimate(
        flops=2 * batch * gw_hidden * (hidden_size + 1) + batch * gw_hidden * 8,
        transcendentals=batch,
        bytes_accessed=(batch * (hidden_size + 1) * 2 + batch * 4
                        + (hidden_size + 1) * gw_hidden * 2
                        + (class_num + 1) * gw_hidden * 4 + 4),
    )

    out = pl.pallas_call(
        kernel,
        out_shape=jax.ShapeDtypeStruct((1, batch), jnp.float32),
        grid=(num_tiles,),
        in_specs=[
            pl.BlockSpec((tile, hidden_size + 1), lambda i: (i, 0)),      # [x | label]
            pl.BlockSpec((hidden_size + 1, gw_hidden), lambda i: (0, 0)), # W1_x (+ zero row)
            pl.BlockSpec((class_num, gw_hidden), lambda i: (0, 0)),       # cls_emb @ W1_emb + b1
            pl.BlockSpec((1, gw_hidden), lambda i: (0, 0)),               # w2 (row)
            pl.BlockSpec(memory_space=pltpu.MemorySpace.SMEM),            # b2 scalar
        ],
        out_specs=pl.BlockSpec((1, tile), lambda i: (0, i)),              # lane-dense out
        compiler_params=pltpu.CompilerParams(
            dimension_semantics=("parallel",),
            vmem_limit_bytes=32 * 1024 * 1024),                           # generous headroom
        cost_estimate=cost,
    )(x_aug, w1_aug, emb_proj, w2row, b2s)

    return out.reshape(batch, WEIGHT_OUTPUT_DIM)


# ----------------------------- pure-JAX reference check -----------------------------
def full_weight_model_ref(params, x_feature, y_label):
    y_emb = jnp.take(params["cls_emb"], y_label, axis=0)
    hidden = jnp.concatenate([y_emb, x_feature], axis=-1)
    z1 = jnp.maximum(hidden @ params["w1"] + params["b1"], 0.0)
    z2 = z1 @ params["w2"] + params["b2"]
    return jax.nn.sigmoid(z2) * WEIGHT_SCALE


if __name__ == "__main__":
    key = jax.random.PRNGKey(0)
    k_params, k_x, k_y, k_x2, k_y2, k_x3, k_y3 = jax.random.split(key, 7)
    params = init_params(k_params)

    # Tolerance is loosened vs. the f32 reference because x / W1 are stored in
    # bf16 inside the kernel (accumulation stays f32).
    TOL = 1e-2

    # Small-shape check (single full-array block).
    B = 8
    x_feature = jax.random.normal(k_x, (B, HIDDEN_SIZE), jnp.float32)
    y_label = jax.random.randint(k_y, (B,), 0, CLASS_NUM, jnp.int32)
    weight = jax.block_until_ready(full_weight_model_forward(params, x_feature, y_label))
    ref = full_weight_model_ref(params, x_feature, y_label)
    assert weight.shape == (B, WEIGHT_OUTPUT_DIM)
    assert jnp.allclose(weight, ref, atol=TOL, rtol=0), "mismatch vs reference (B=8)"

    # Non-8-aligned single-block check.
    B2 = 300
    x2 = jax.random.normal(k_x2, (B2, HIDDEN_SIZE), jnp.float32)
    y2 = jax.random.randint(k_y2, (B2,), 0, CLASS_NUM, jnp.int32)
    w2_out = jax.block_until_ready(full_weight_model_forward(params, x2, y2))
    ref2 = full_weight_model_ref(params, x2, y2)
    assert w2_out.shape == (B2, WEIGHT_OUTPUT_DIM)
    assert jnp.allclose(w2_out, ref2, atol=TOL, rtol=0), "mismatch vs reference (B=300)"

    # Multi-tile, ragged-last-block check (no host-side padding).
    B3 = 2000
    x3 = jax.random.normal(k_x3, (B3, HIDDEN_SIZE), jnp.float32)
    y3 = jax.random.randint(k_y3, (B3,), 0, CLASS_NUM, jnp.int32)
    w3_out = jax.block_until_ready(full_weight_model_forward(params, x3, y3))
    ref3 = full_weight_model_ref(params, x3, y3)
    assert w3_out.shape == (B3, WEIGHT_OUTPUT_DIM)
    assert jnp.allclose(w3_out, ref3, atol=TOL, rtol=0), "mismatch vs reference (B=2000)"

    print("KERNEL_OK")
</pallas_src>

<mosaic_0001>
module attributes {stable_mosaic.version = 11 : i64} {
  func.func @_full_weight_kernel(%arg0: i32, %arg1: memref<8x33xbf16, #tpu.memory_space<vmem>>, %arg2: memref<33x32xbf16, #tpu.memory_space<vmem>>, %arg3: memref<4x32xf32, #tpu.memory_space<vmem>>, %arg4: memref<1x32xf32, #tpu.memory_space<vmem>>, %arg5: memref<1xf32, #tpu.memory_space<smem>>, %arg6: memref<1x8xf32, #tpu.memory_space<vmem>>) attributes {dimension_semantics = [#tpu.dimension_semantics<parallel>], iteration_bounds = array<i64: 1>, scalar_prefetch = 0 : i64, scratch_operands = 0 : i64, tpu.core_type = #tpu.core_type<tc>, window_params = [{transform_indices = @transform_0, window_bounds = array<i64: 8, 33>}, {pipeline_mode = #tpu.pipeline_mode<synchronous>, transform_indices = @transform_1, window_bounds = array<i64: 33, 32>}, {pipeline_mode = #tpu.pipeline_mode<synchronous>, transform_indices = @transform_2, window_bounds = array<i64: 4, 32>}, {pipeline_mode = #tpu.pipeline_mode<synchronous>, transform_indices = @transform_3, window_bounds = array<i64: 1, 32>}, {transform_indices = @transform_4, window_bounds = array<i64: 1>}, {transform_indices = @transform_5, window_bounds = array<i64: 1, 8>}]} {
    %c0 = arith.constant 0 : index
    %c0_0 = arith.constant 0 : index
    %0 = vector.load %arg1[%c0, %c0_0] : memref<8x33xbf16, #tpu.memory_space<vmem>>, vector<8x33xbf16>
    %c0_1 = arith.constant 0 : index
    %c0_2 = arith.constant 0 : index
    %1 = vector.load %arg2[%c0_1, %c0_2] : memref<33x32xbf16, #tpu.memory_space<vmem>>, vector<33x32xbf16>
    %cst = arith.constant dense<0.000000e+00> : vector<8x32xf32>
    %2 = tpu.matmul %0, %1, %cst {dimension_numbers = #tpu.dot_dimension_numbers<[1], [0], [0], [1], [0, 0, 1, 1], [], []>} : vector<8x33xbf16>, vector<33x32xbf16>, vector<8x32xf32> -> vector<8x32xf32>
    %3 = vector.extract_strided_slice %0 {offsets = [0, 32], sizes = [8, 1], strides = [1, 1]} : vector<8x33xbf16> to vector<8x1xbf16>
    %4 = arith.extf %3 : vector<8x1xbf16> to vector<8x1xf32>
    %c0_3 = arith.constant 0 : index
    %c0_4 = arith.constant 0 : index
    %5 = vector.load %arg3[%c0_3, %c0_4] : memref<4x32xf32, #tpu.memory_space<vmem>>, vector<4x32xf32>
    %6 = vector.extract_strided_slice %5 {offsets = [3, 0], sizes = [1, 32], strides = [1, 1]} : vector<4x32xf32> to vector<1x32xf32>
    %7 = vector.shape_cast %6 : vector<1x32xf32> to vector<32xf32>
    %cst_5 = arith.constant 2.000000e+00 : f32
    %8 = vector.broadcast %cst_5 : f32 to vector<8x1xf32>
    %9 = arith.cmpf oeq, %4, %8 : vector<8x1xf32>
    %10 = vector.extract_strided_slice %5 {offsets = [2, 0], sizes = [1, 32], strides = [1, 1]} : vector<4x32xf32> to vector<1x32xf32>
    %11 = vector.shape_cast %10 : vector<1x32xf32> to vector<32xf32>
    %12 = vector.shape_cast %9 : vector<8x1xi1> to vector<8x1xi1>
    %13 = vector.broadcast %12 : vector<8x1xi1> to vector<8x32xi1>
    %14 = vector.shape_cast %11 : vector<32xf32> to vector<1x32xf32>
    %15 = vector.broadcast %14 : vector<1x32xf32> to vector<8x32xf32>
    %16 = vector.shape_cast %7 : vector<32xf32> to vector<1x32xf32>
    %17 = vector.broadcast %16 : vector<1x32xf32> to vector<8x32xf32>
    %18 = arith.select %13, %15, %17 : vector<8x32xi1>, vector<8x32xf32>
    %cst_6 = arith.constant 1.000000e+00 : f32
    %19 = vector.broadcast %cst_6 : f32 to vector<8x1xf32>
    %20 = arith.cmpf oeq, %4, %19 : vector<8x1xf32>
    %21 = vector.extract_strided_slice %5 {offsets = [1, 0], sizes = [1, 32], strides = [1, 1]} : vector<4x32xf32> to vector<1x32xf32>
    %22 = vector.shape_cast %21 : vector<1x32xf32> to vector<32xf32>
    %23 = vector.shape_cast %20 : vector<8x1xi1> to vector<8x1xi1>
    %24 = vector.broadcast %23 : vector<8x1xi1> to vector<8x32xi1>
    %25 = vector.shape_cast %22 : vector<32xf32> to vector<1x32xf32>
    %26 = vector.broadcast %25 : vector<1x32xf32> to vector<8x32xf32>
    %27 = arith.select %24, %26, %18 : vector<8x32xi1>, vector<8x32xf32>
    %cst_7 = arith.constant 0.000000e+00 : f32
    %28 = vector.broadcast %cst_7 : f32 to vector<8x1xf32>
    %29 = arith.cmpf oeq, %4, %28 : vector<8x1xf32>
    %30 = vector.extract_strided_slice %5 {offsets = [0, 0], sizes = [1, 32], strides = [1, 1]} : vector<4x32xf32> to vector<1x32xf32>
    %31 = vector.shape_cast %30 : vector<1x32xf32> to vector<32xf32>
    %32 = vector.shape_cast %29 : vector<8x1xi1> to vector<8x1xi1>
    %33 = vector.broadcast %32 : vector<8x1xi1> to vector<8x32xi1>
    %34 = vector.shape_cast %31 : vector<32xf32> to vector<1x32xf32>
    %35 = vector.broadcast %34 : vector<1x32xf32> to vector<8x32xf32>
    %36 = arith.select %33, %35, %27 : vector<8x32xi1>, vector<8x32xf32>
    %37 = arith.addf %2, %36 : vector<8x32xf32>
    %cst_8 = arith.constant 0.000000e+00 : f32
    %38 = vector.broadcast %cst_8 : f32 to vector<8x32xf32>
    %39 = arith.maximumf %37, %38 : vector<8x32xf32>
    %c0_9 = arith.constant 0 : index
    %c0_10 = arith.constant 0 : index
    %40 = vector.load %arg4[%c0_9, %c0_10] : memref<1x32xf32, #tpu.memory_space<vmem>>, vector<1x32xf32>
    %41 = vector.broadcast %40 : vector<1x32xf32> to vector<8x32xf32>
    %42 = arith.mulf %39, %41 : vector<8x32xf32>
    %cst_11 = arith.constant dense<0.000000e+00> : vector<8xf32>
    %43 = vector.multi_reduction <add>, %42, %cst_11 [1] : vector<8x32xf32> to vector<8xf32>
    %c0_12 = arith.constant 0 : index
    %44 = memref.load %arg5[%c0_12] : memref<1xf32, #tpu.memory_space<smem>>
    %45 = vector.broadcast %44 : f32 to vector<8xf32>
    %46 = arith.addf %43, %45 : vector<8xf32>
    %47 = arith.negf %46 : vector<8xf32>
    %48 = math.exp %47 : vector<8xf32>
    %cst_13 = arith.constant 1.000000e+00 : f32
    %49 = vector.broadcast %cst_13 : f32 to vector<8xf32>
    %50 = arith.addf %49, %48 : vector<8xf32>
    %51 = arith.divf %49, %50 : vector<8xf32>
    %52 = vector.shape_cast %51 : vector<8xf32> to vector<1x8xf32>
    %c0_14 = arith.constant 0 : index
    %c0_15 = arith.constant 0 : index
    %53 = vector.load %arg6[%c0_14, %c0_15] : memref<1x8xf32, #tpu.memory_space<vmem>>, vector<1x8xf32>
    tpu.vector_store %arg6[%c0_14, %c0_15], %52 {strides = array<i32>} : memref<1x8xf32, #tpu.memory_space<vmem>>, vector<1x8xf32>,
    return
  }
  func.func @transform_0(%arg0: i32) -> (i32, i32) {
    %c0_i32 = arith.constant 0 : i32
    %c0_i32_0 = arith.constant 0 : i32
    return %arg0, %c0_i32 : i32, i32
  }
  func.func @transform_1(%arg0: i32) -> (i32, i32) {
    %c0_i32 = arith.constant 0 : i32
    %c0_i32_0 = arith.constant 0 : i32
    %c0_i32_1 = arith.constant 0 : i32
    return %c0_i32, %c0_i32_0 : i32, i32
  }
  func.func @transform_2(%arg0: i32) -> (i32, i32) {
    %c0_i32 = arith.constant 0 : i32
    %c0_i32_0 = arith.constant 0 : i32
    %c0_i32_1 = arith.constant 0 : i32
    return %c0_i32, %c0_i32_0 : i32, i32
  }
  func.func @transform_3(%arg0: i32) -> (i32, i32) {
    %c0_i32 = arith.constant 0 : i32
    %c0_i32_0 = arith.constant 0 : i32
    %c0_i32_1 = arith.constant 0 : i32
    return %c0_i32, %c0_i32_0 : i32, i32
  }
  func.func @transform_4(%arg0: i32) -> i32 {
    %c0_i32 = arith.constant 0 : i32
    %c0_i32_0 = arith.constant 0 : i32
    return %c0_i32 : i32
  }
  func.func @transform_5(%arg0: i32) -> (i32, i32) {
    %c0_i32 = arith.constant 0 : i32
    %c0_i32_0 = arith.constant 0 : i32
    return %c0_i32, %arg0 : i32, i32
  }
}

</mosaic_0001>

<llo_original>
// kernel: full_weight_model_forward.1
$region0: #{full_weight_model_forward.1}
  #allocation0 [shape = 'u32[]', space=smem, size = 0x4, offset = 0x4, fixed_abs, tag = 'smem constant byte address 0x4 - core index']
  #allocation1 [shape = 'u32[144,128]{1,0:T(1,128)}', space=vmem, size = 0x12000, scoped, tag = 'internal scratch']
  #allocation2 [shape = 'f32[1]{0:T(128)S(6)}', space=smem, size = 0x200, scoped, tag = 'scoped memory for full_weight_model_forward.1']
  %s0 = inlined_call_operand.vmem [shape: bf16[8,33], index: 0, kind: input, shape index: {}]
  %s1 = inlined_call_operand.vmem [shape: bf16[33,32], index: 1, kind: input, shape index: {}]
  %s2 = inlined_call_operand.vmem [shape: f32[4,32], index: 2, kind: input, shape index: {}]
  %s3 = inlined_call_operand.vmem [shape: f32[1,32], index: 3, kind: input, shape index: {}]
  %s4 = inlined_call_operand.<no memory space> [shape: f32[1], index: 4, kind: input, shape index: {}]
  %s5 = inlined_call_operand.hbm [shape: f32[1,8], index: 5, kind: output, shape index: {}]
  %s6 = sld [smem:[#allocation0]]
  $region30: #{full_weight_model_forward.1} parent=0
    _
  %s8 = ssub.s32 1, %s6
  %s9 = scalar_select 0, %s8, %s6
  %10 = sst [smem:[#allocation2]] %s4
  $region1: #{full_weight_model_forward.1} parent=0
    #allocation3 [shape = 'u8[512]{0}', space=vmem, size = 0x400, scoped, tag = 'output window, operand 0, single buffered']
    #allocation4 [shape = 's32[1]{0}', space=sflag, size = 0x4, scoped, tag = 'scoped memory for full_weight_model_forward.1']
    %11 = vsyncpa [#allocation4], 0
    // Predicated region
    $region2: #{full_weight_model_forward.1} parent=1 // pred_check
      _
    $region3: #{full_weight_model_forward.1} parent=1 // pred_check_branch
      %13 = sbr.rel (0) target = $region5
    $region4: #{full_weight_model_forward.1} parent=1 // pred_region
      _
    $region5: #{full_weight_model_forward.1} parent=1 // pred_fallthru
      _
    // Predicated region
    $region6: #{full_weight_model_forward.1} parent=1 // pred_check
      _
    $region7: #{full_weight_model_forward.1} parent=1 // pred_check_branch
      %15 = sbr.rel (0) target = $region9
    $region8: #{full_weight_model_forward.1} parent=1 // pred_region
      _
    $region9: #{full_weight_model_forward.1} parent=1 // pred_fallthru
      _
    // Predicated region
    $region10: #{full_weight_model_forward.1} parent=1 // pred_check
      _
    $region11: #{full_weight_model_forward.1} parent=1 // pred_check_branch
      %17 = sbr.rel (0) target = $region13
    $region12: #{full_weight_model_forward.1} parent=1 // pred_region
      _
    $region13: #{full_weight_model_forward.1} parent=1 // pred_fallthru
      _
    // Predicated region
    $region14: #{full_weight_model_forward.1} parent=1 // pred_check
      _
    $region15: #{full_weight_model_forward.1} parent=1 // pred_check_branch
      %19 = sbr.rel (0) target = $region17
    $region16: #{full_weight_model_forward.1} parent=1 // pred_region
      _
    $region17: #{full_weight_model_forward.1} parent=1 // pred_fallthru
      _
    // Predicated region
    $region18: #{full_weight_model_forward.1} parent=1 // pred_check
      _
    $region19: #{full_weight_model_forward.1} parent=1 // pred_check_branch
      %21 = sbr.rel (0) target = $region21
    $region20: #{full_weight_model_forward.1} parent=1 // pred_region
      _
    $region21: #{full_weight_model_forward.1} parent=1 // pred_fallthru
      _
    %v23 = vld [vmem:[%s0] sm:$0xf]
    %v24 = vld [vmem:[%s1] sm:$0xf]
    %v25 = vld [vmem:[%s1 + $0x4] sm:$0xf]
    %v26 = vld [vmem:[%s1 + $0x8] sm:$0xf]
    %v27 = vld [vmem:[%s1 + $0xc] sm:$0xf]
    %v28 = vld [vmem:[%s1 + $0x10] sm:$0x1]
    %v29 = vunpack.c.l.bf16 %v23
    %v30 = vld [vmem:[%s2] sm:$0xf]
    %vm31 = vcmp.eq.f32.partialorder %v29, 2.0
    %v32 = vsel %vm31, 1, 0
    %33 = vset.pattern.permute.xlu0 32
    %34 = vperm.xlu0 %33, %v32
    %v35 = vpop.permute.xlu0 %34
    %vm36 = vcmp.eq.s32.totalorder %v35, 1
    %v37 = vlaneseq
    %v38 = vshrl.u32 %v37, 7
    %v39 = vsub.s32 2, %v38
    %v40 = vrot.slane %v30, %v39
    %v41 = vlaneseq
    %v42 = vshrl.u32 %v41, 7
    %v43 = vsub.s32 3, %v42
    %v44 = vrot.slane %v30, %v43
    %v45 = vsel %vm36, %v40, %v44
    %vm46 = vcmp.eq.f32.partialorder %v29, 1.0
    %v47 = vsel %vm46, 1, 0
    %48 = vset.pattern.permute.xlu0 32
    %49 = vperm.xlu0 %48, %v47
    %v50 = vpop.permute.xlu0 %49
    %vm51 = vcmp.eq.s32.totalorder %v50, 1
    %v52 = vlaneseq
    %v53 = vshrl.u32 %v52, 7
    %v54 = vsub.s32 1, %v53
    %v55 = vrot.slane %v30, %v54
    %v56 = vsel %vm51, %v55, %v45
    %vm57 = vcmp.eq.f32.partialorder %v29, 0.0
    %v58 = vsel %vm57, 1, 0
    %59 = vset.pattern.permute.xlu0 32
    %60 = vperm.xlu0 %59, %v58
    %v61 = vpop.permute.xlu0 %60
    %vm62 = vcmp.eq.s32.totalorder %v61, 1
    %v63 = vlaneseq
    %v64 = vshrl.u32 %v63, 7
    %v65 = vsub.s32 0, %v64
    %v66 = vrot.slane %v30, %v65
    %v67 = vsel %vm62, %v66, %v56
    %v73 = vunpack.c.l.b16 %v24
    %v74 = vunpack.c.l.b16 %v25
    %v75 = vunpack.c.l.b16 %v26
    %v76 = vunpack.c.l.b16 %v27
    %v77 = vunpack.c.l.b16 %v28
    %v78 = vpack.c.b16 %v74, %v73
    %v79 = vpack.c.b16 %v76, %v75
    %v80 = vpack.c.b16 %v77, %v77
    %vm83 = vcmask 269312
    %v85 = vsel %vm83, %v23, 0
    %vm87 = vcmask 1040384
    %v88 = vsel 0, 4294967295, 65535
    %v89 = vsel %vm87, %v88, 0
    %v91 = vand.u32 %v80, %v89
    %93 = vmatprep.subr.bf16.mxu0 0
    %94 = vmatpush1.bf16.msra.mxu0 0
    %95 = vmatprep.subr.bf16.mxu0 0
    %96 = vmatpush1.bf16.msra.mxu0 0
    %97 = vmatprep.subr.bf16.mxu0 0
    %98 = vmatpush1.bf16.msra.mxu0 0
    %99 = vmatprep.subr.bf16.mxu0 0
    %100 = vmatpush1.bf16.msra.mxu0 0
    %101 = vmatprep.subr.bf16.mxu0 0
    %102 = vmatpush1.bf16.msra.mxu0 0
    %103 = vmatprep.subr.bf16.mxu0 0
    %104 = vmatpush1.bf16.msra.mxu0 %v91
    %105 = vmatprep.subr.bf16.mxu0 0
    %106 = vmatpush1.bf16.msra.mxu0 %v79
    %107 = vmatprep.subr.bf16.mxu0 0
    %108 = vmatpush1.bf16.msra.mxu0 %v78
    %109 = vmatprep.subr.bf16.mxu0 0
    %110 = vmatpush2.bf16.msra.mxu0 0
    %111 = vmatprep.subr.bf16.mxu0 0
    %112 = vmatpush2.bf16.msra.mxu0 0
    %113 = vmatprep.subr.bf16.mxu0 0
    %114 = vmatpush2.bf16.msra.mxu0 0
    %115 = vmatprep.subr.bf16.mxu0 0
    %116 = vmatpush2.bf16.msra.mxu0 0
    %117 = vmatprep.subr.bf16.mxu0 0
    %118 = vmatpush2.bf16.msra.mxu0 0
    %119 = vmatprep.subr.bf16.mxu0 0
    %120 = vmatpush2.bf16.msra.mxu0 0
    %121 = vmatprep.subr.bf16.mxu0 0
    %122 = vmatpush2.bf16.msra.mxu0 0
    %123 = vmatprep.subr.bf16.mxu0 0
    %124 = vmatpush2.bf16.msra.mxu0 0
    %125 = vmatprep.mubr.bf16.mxu0 0
    %126 = vmatmul.mubr.bf16.gmra.mxu0 %v85
    %v127 = vpop.f32.mrf.mxu0
    %v128 = vadd.f32 %v67, %v127
    %v129 = vpop.f32.mrf.mxu0
    %v130 = vpop.f32.mrf.mxu0
    %v131 = vpop.f32.mrf.mxu0
    %132 = vdwg.mxu0
    %v133 = vmax.f32 %v128, 0.0
    %v134 = vld [vmem:[%s3] sm:$0x1]
    %v136 = vlaneseq
    %v137 = vshrl.u32 %v136, 7
    %v138 = vsub.s32 0, %v137
    %v139 = vrot.slane %v134, %v138
    %v141 = vmul.f32 %v133, %v139
    %vm142 = vcmask 261120
    %v143 = vsel %vm142, %v141, 0.0
    %144 = vadd.xlane.f32.xlu0 %v143
    %v145 = vpop.xlane.xlu0 %144
    %s146 = sld [smem:[#allocation2]]
    %v147 = vstv %s146
    %v148 = vadd.f32 %v145, %v147
    %v149 = vxor.u32 %v148, 2147483648
    %v150 = vmul.f32 %v149, 1.442695
    %v151 = vpow.pop %v150
    %v152 = vadd.f32 %v151, 1.0
    %v153 = vrcp.pop %v152
    %v154 = vmul.f32 1.0, %v153
    %v156 = vlaneseq
    %v157 = vand.u32 %v156, 127
    %v158 = vlaneseq
    %v159 = vshrl.u32 %v158, 7
    %v160 = vsub.s32 %v157, %v159
    %v161 = vrot.slane %v154, %v160
    %vm163 = vcmask 57344
    %164 = vst.msk [vmem:[#allocation3] sm:$0x1] %vm163, %v161
    // Predicated region
    $region22: #{full_weight_model_forward.1} parent=1 // pred_check
      _
    $region23: #{full_weight_model_forward.1} parent=1 // pred_check_branch
      %166 = sbr.rel (0) target = $region25
    $region24: #{full_weight_model_forward.1} parent=1 // pred_region
      %s168 = ssub.s32 16, 16
      %169 = vsyncadd [#allocation4], %s168
      %s171 = sshll.u32 [#allocation3], 4
      %s172 = int_to_ptr.vmem [resolvable:$true] %s171
      %174 = dma.vmem_to_hbm [thread:$0]  %s172, 16, %s5, [#allocation4]
    $region25: #{full_weight_model_forward.1} parent=1 // pred_fallthru
      _
    // Predicated region
    $region26: #{full_weight_model_forward.1} parent=1 // pred_check
      _
    $region27: #{full_weight_model_forward.1} parent=1 // pred_check_branch
      %176 = sbr.rel (0) target = $region29
    $region28: #{full_weight_model_forward.1} parent=1 // pred_region
      %177 = dma.done [#allocation4], 16
    $region29: #{full_weight_model_forward.1} parent=1 // pred_fallthru
      _
    %178 = vsyncpa [#allocation4], 1

</llo_original>
